<compile_context>
chip_gen: v5e
topology: v5e:2x2
jax: 0.10.0
libtpu: 0.0.40
codegen_flags: <defaults>
</compile_context>

<pallas_src>
from functools import partial

import jax
import jax.numpy as jnp
import numpy as np
from jax.experimental import pallas as pl
from jax.experimental.pallas import tpu as pltpu


def _round_up(x, m):
    return ((x + m - 1) // m) * m


def _make_policy_kernel(n_layers):
    """n_layers Linear layers; ReLU on all but the last, softmax after the last
    (over the lane-padded width; padded logits are -1e30 -> exp == 0)."""

    def kernel(*refs):
        x_ref = refs[0]
        o_ref = refs[-1]
        param_refs = refs[1:-1]  # interleaved (w0, b0, w1, b1, ...)

        x = x_ref[...]
        for i in range(n_layers):
            w = param_refs[2 * i][...]
            b = param_refs[2 * i + 1][...]
            # MXU consumes w/x in their native dtype; accumulate in f32.
            x = jnp.dot(x, w, preferred_element_type=jnp.float32) + b
            if i < n_layers - 1:
                x = jnp.maximum(x, 0.0)  # F.relu

        # Numerically-stable softmax over the lane-dense padded last dim.
        m = jnp.max(x, axis=-1, keepdims=True)
        e = jnp.exp(x - m)
        denom = jnp.sum(e, axis=-1, keepdims=True)
        # Reciprocal on the EUP instead of a VALU divide.
        o_ref[...] = (e * pl.reciprocal(denom, approx=False)).astype(o_ref.dtype)

    return kernel


def prepare_params(weights, biases):
    """One-time prep: pad the final layer to a 128-lane-dense width.

    Call once and reuse the result; the per-call forward then does no weight
    padding.  Padded weight columns are 0 and padded bias entries are -1e30 so
    the extra logits exp-underflow to exactly 0 and never perturb the softmax.
    """
    weights = list(weights)
    biases = list(biases)
    action_dim = weights[-1].shape[1]
    a_pad = _round_up(action_dim, 128)
    if a_pad != action_dim:
        pad = a_pad - action_dim
        weights[-1] = jnp.pad(weights[-1], ((0, 0), (0, pad)))
        biases[-1] = jnp.pad(biases[-1], ((0, 0), (0, pad)), constant_values=-1e30)
    return tuple(weights), tuple(biases)


@partial(jax.jit, static_argnames=("action_dim", "block_b", "max_block_b"))
def discrete_policy_forward(state, weights, biases, *, action_dim,
                            block_b=None, max_block_b=1024):
    """state: (B, state_dim). weights[i]: (in_i, out_i). biases[i]: (1, out_i).

    Pass params through prepare_params() once (lane-dense last layer); otherwise
    a fallback pad runs inside this jitted call.  Returns (B, action_dim) f32.
    """
    B, state_dim = state.shape
    n_layers = len(weights)

    weights = list(weights)
    biases = list(biases)
    a_pad = _round_up(weights[-1].shape[1], 128)
    if a_pad != weights[-1].shape[1]:
        # Fallback; prefer prepare_params so this is a one-time cost, not per call.
        pad = a_pad - weights[-1].shape[1]
        weights[-1] = jnp.pad(weights[-1], ((0, 0), (0, pad)))
        biases[-1] = jnp.pad(biases[-1], ((0, 0), (0, pad)), constant_values=-1e30)

    # Tiny sublane pad (<=7 rows) only when B % 8 != 0, so block shapes stay
    # (8,128)-legal; the partial last batch block is otherwise handled by Pallas
    # masking (no full power-of-two batch pad / extra HBM copy).
    b8 = _round_up(B, 8)
    if b8 != B:
        state = jnp.pad(state, ((0, b8 - B), (0, 0)))

    # Batch tile: MXU-aligned; >=2 grid steps when the batch allows it (keeps both
    # v7x TensorCores busy), capped so single-TC v5e/v6e run few, large tiles.
    if block_b is None:
        if b8 <= 128:
            block_b = b8
        else:
            block_b = min(_round_up(pl.cdiv(b8, 2), 128), max_block_b)
    block_b = min(_round_up(block_b, 8), b8)
    grid_b = pl.cdiv(b8, block_b)

    # VMEM budgeting: single-buffer the constant-index weights once they get big,
    # and raise the scoped VMEM limit only when the footprint actually needs it.
    param_bytes = sum(int(np.prod(p.shape)) * p.dtype.itemsize
                      for p in (weights + biases))
    single_buffer_params = param_bytes > (4 << 20)
    widths = [state_dim] + [w.shape[1] for w in weights]
    io_bytes = 2 * block_b * (state_dim + a_pad) * 4       # double-buffered in/out tiles
    act_bytes = 2 * block_b * max(widths) * 4              # intermediate activations
    footprint = param_bytes * (1 if single_buffer_params else 2) + io_bytes + act_bytes
    vmem_limit = None
    if footprint > (16 << 20):
        vmem_limit = int(min(footprint * 5 // 4, 64 << 20))

    param_block_kwargs = (
        dict(pipeline_mode=pl.Buffered(1)) if single_buffer_params else {}
    )

    in_specs = [pl.BlockSpec((block_b, state_dim), lambda i: (i, 0))]
    params = []
    for w, b in zip(weights, biases):
        # Constant block index: weights/biases stay VMEM-resident across grid steps.
        in_specs.append(pl.BlockSpec(w.shape, lambda i: (0, 0), **param_block_kwargs))
        in_specs.append(pl.BlockSpec(b.shape, lambda i: (0, 0), **param_block_kwargs))
        params.extend([w, b])

    out_spec = pl.BlockSpec((block_b, a_pad), lambda i: (i, 0))

    out = pl.pallas_call(
        _make_policy_kernel(n_layers),
        out_shape=jax.ShapeDtypeStruct((b8, a_pad), jnp.float32),
        grid_spec=pltpu.PrefetchScalarGridSpec(
            num_scalar_prefetch=0,
            grid=(grid_b,),
            in_specs=in_specs,
            out_specs=out_spec,
        ),
        compiler_params=pltpu.CompilerParams(
            dimension_semantics=("parallel",),
            vmem_limit_bytes=vmem_limit,
        ),
    )(state, *params)

    return out[:B, :action_dim]


def init_params(key, state_dim, action_dim, hidden_dims=(128,)):
    """Deterministic PyTorch-style Linear init: U(-1/sqrt(fan_in), 1/sqrt(fan_in)).
    Weights returned as (in_dim, out_dim)."""
    dims = [state_dim, *hidden_dims, action_dim]
    weights, biases = [], []
    for i in range(len(dims) - 1):
        fan_in, fan_out = dims[i], dims[i + 1]
        key, kw, kb = jax.random.split(key, 3)
        bound = 1.0 / np.sqrt(fan_in)
        w = jax.random.uniform(kw, (fan_in, fan_out), jnp.float32, -bound, bound)
        b = jax.random.uniform(kb, (1, fan_out), jnp.float32, -bound, bound)
        weights.append(w)
        biases.append(b)
    return weights, biases


def reference_forward(state, weights, biases):
    x = state
    for i, (w, b) in enumerate(zip(weights, biases)):
        x = x @ w + b
        if i < len(weights) - 1:
            x = jnp.maximum(x, 0.0)
    return jax.nn.softmax(x, axis=-1)


if __name__ == "__main__":
    key = jax.random.PRNGKey(0)

    # (batch, state_dim, hidden_dims, action_dim) configs: a non-multiple batch
    # (partial last block) and small action_dims exercise both padding paths.
    configs = [
        (200, 32, (128,), 8),
        (64, 20, (128, 64), 6),
    ]

    for batch, state_dim, hidden_dims, action_dim in configs:
        key, k_state, k_params = jax.random.split(key, 3)
        state = jax.random.normal(k_state, (batch, state_dim), jnp.float32)
        weights, biases = init_params(k_params, state_dim, action_dim, hidden_dims)

        # One-time lane-dense padding of the output layer (hoisted out of the
        # per-call forward path).
        weights_p, biases_p = prepare_params(weights, biases)

        prob = discrete_policy_forward(state, weights_p, biases_p, action_dim=action_dim)
        prob = jax.block_until_ready(prob)

        ref = reference_forward(state, weights, biases)
        np.testing.assert_allclose(np.asarray(prob), np.asarray(ref), rtol=1e-5, atol=1e-5)
        # Each row is a probability distribution.
        np.testing.assert_allclose(
            np.asarray(prob).sum(axis=-1), np.ones(batch), rtol=1e-5, atol=1e-5
        )

    print("KERNEL_OK")
</pallas_src>

<mosaic_0001>
module attributes {stable_mosaic.version = 11 : i64} {
  func.func @kernel(%arg0: i32, %arg1: memref<128x32xf32, #tpu.memory_space<vmem>>, %arg2: memref<32x128xf32, #tpu.memory_space<vmem>>, %arg3: memref<1x128xf32, #tpu.memory_space<vmem>>, %arg4: memref<128x128xf32, #tpu.memory_space<vmem>>, %arg5: memref<1x128xf32, #tpu.memory_space<vmem>>, %arg6: memref<128x128xf32, #tpu.memory_space<vmem>>) attributes {dimension_semantics = [#tpu.dimension_semantics<parallel>], iteration_bounds = array<i64: 2>, scalar_prefetch = 0 : i64, scratch_operands = 0 : i64, tpu.core_type = #tpu.core_type<tc>, window_params = [{transform_indices = @transform_0, window_bounds = array<i64: 128, 32>}, {pipeline_mode = #tpu.pipeline_mode<synchronous>, transform_indices = @transform_1, window_bounds = array<i64: 32, 128>}, {pipeline_mode = #tpu.pipeline_mode<synchronous>, transform_indices = @transform_2, window_bounds = array<i64: 1, 128>}, {pipeline_mode = #tpu.pipeline_mode<synchronous>, transform_indices = @transform_3, window_bounds = array<i64: 128, 128>}, {pipeline_mode = #tpu.pipeline_mode<synchronous>, transform_indices = @transform_4, window_bounds = array<i64: 1, 128>}, {transform_indices = @transform_5, window_bounds = array<i64: 128, 128>}]} {
    %c0 = arith.constant 0 : index
    %c0_0 = arith.constant 0 : index
    %0 = vector.load %arg1[%c0, %c0_0] : memref<128x32xf32, #tpu.memory_space<vmem>>, vector<128x32xf32>
    %c0_1 = arith.constant 0 : index
    %c0_2 = arith.constant 0 : index
    %1 = vector.load %arg2[%c0_1, %c0_2] : memref<32x128xf32, #tpu.memory_space<vmem>>, vector<32x128xf32>
    %c0_3 = arith.constant 0 : index
    %c0_4 = arith.constant 0 : index
    %2 = vector.load %arg3[%c0_3, %c0_4] : memref<1x128xf32, #tpu.memory_space<vmem>>, vector<1x128xf32>
    %cst = arith.constant dense<0.000000e+00> : vector<128x128xf32>
    %3 = tpu.matmul %0, %1, %cst {dimension_numbers = #tpu.dot_dimension_numbers<[1], [0], [0], [1], [0, 0, 1, 1], [], []>} : vector<128x32xf32>, vector<32x128xf32>, vector<128x128xf32> -> vector<128x128xf32>
    %4 = vector.broadcast %2 : vector<1x128xf32> to vector<128x128xf32>
    %5 = arith.addf %3, %4 : vector<128x128xf32>
    %cst_5 = arith.constant 0.000000e+00 : f32
    %6 = vector.broadcast %cst_5 : f32 to vector<128x128xf32>
    %7 = arith.maximumf %5, %6 : vector<128x128xf32>
    %c0_6 = arith.constant 0 : index
    %c0_7 = arith.constant 0 : index
    %8 = vector.load %arg4[%c0_6, %c0_7] : memref<128x128xf32, #tpu.memory_space<vmem>>, vector<128x128xf32>
    %c0_8 = arith.constant 0 : index
    %c0_9 = arith.constant 0 : index
    %9 = vector.load %arg5[%c0_8, %c0_9] : memref<1x128xf32, #tpu.memory_space<vmem>>, vector<1x128xf32>
    %cst_10 = arith.constant dense<0.000000e+00> : vector<128x128xf32>
    %10 = tpu.matmul %7, %8, %cst_10 {dimension_numbers = #tpu.dot_dimension_numbers<[1], [0], [0], [1], [0, 0, 1, 1], [], []>} : vector<128x128xf32>, vector<128x128xf32>, vector<128x128xf32> -> vector<128x128xf32>
    %11 = vector.broadcast %9 : vector<1x128xf32> to vector<128x128xf32>
    %12 = arith.addf %10, %11 : vector<128x128xf32>
    %cst_11 = arith.constant dense<0xFF800000> : vector<128xf32>
    %13 = vector.multi_reduction <maximumf>, %12, %cst_11 [1] : vector<128x128xf32> to vector<128xf32>
    %14 = vector.shape_cast %13 : vector<128xf32> to vector<128x1xf32>
    %15 = vector.broadcast %14 : vector<128x1xf32> to vector<128x128xf32>
    %16 = arith.subf %12, %15 : vector<128x128xf32>
    %17 = math.exp %16 : vector<128x128xf32>
    %cst_12 = arith.constant dense<0.000000e+00> : vector<128xf32>
    %18 = vector.multi_reduction <add>, %17, %cst_12 [1] : vector<128x128xf32> to vector<128xf32>
    %19 = vector.shape_cast %18 : vector<128xf32> to vector<128x1xf32>
    %20 = tpu.reciprocal %19 : vector<128x1xf32> -> vector<128x1xf32>
    %21 = vector.broadcast %20 : vector<128x1xf32> to vector<128x128xf32>
    %22 = arith.mulf %17, %21 : vector<128x128xf32>
    %c0_13 = arith.constant 0 : index
    %c0_14 = arith.constant 0 : index
    %23 = vector.load %arg6[%c0_13, %c0_14] : memref<128x128xf32, #tpu.memory_space<vmem>>, vector<128x128xf32>
    tpu.vector_store %arg6[%c0_13, %c0_14], %22 {strides = array<i32>} : memref<128x128xf32, #tpu.memory_space<vmem>>, vector<128x128xf32>,
    return
  }
  func.func @transform_0(%arg0: i32) -> (i32, i32) {
    %c0_i32 = arith.constant 0 : i32
    %c0_i32_0 = arith.constant 0 : i32
    return %arg0, %c0_i32 : i32, i32
  }
  func.func @transform_1(%arg0: i32) -> (i32, i32) {
    %c0_i32 = arith.constant 0 : i32
    %c0_i32_0 = arith.constant 0 : i32
    %c0_i32_1 = arith.constant 0 : i32
    return %c0_i32, %c0_i32_0 : i32, i32
  }
  func.func @transform_2(%arg0: i32) -> (i32, i32) {
    %c0_i32 = arith.constant 0 : i32
    %c0_i32_0 = arith.constant 0 : i32
    %c0_i32_1 = arith.constant 0 : i32
    return %c0_i32, %c0_i32_0 : i32, i32
  }
  func.func @transform_3(%arg0: i32) -> (i32, i32) {
    %c0_i32 = arith.constant 0 : i32
    %c0_i32_0 = arith.constant 0 : i32
    %c0_i32_1 = arith.constant 0 : i32
    return %c0_i32, %c0_i32_0 : i32, i32
  }
  func.func @transform_4(%arg0: i32) -> (i32, i32) {
    %c0_i32 = arith.constant 0 : i32
    %c0_i32_0 = arith.constant 0 : i32
    %c0_i32_1 = arith.constant 0 : i32
    return %c0_i32, %c0_i32_0 : i32, i32
  }
  func.func @transform_5(%arg0: i32) -> (i32, i32) {
    %c0_i32 = arith.constant 0 : i32
    %c0_i32_0 = arith.constant 0 : i32
    return %arg0, %c0_i32 : i32, i32
  }
}

</mosaic_0001>

<llo_original>
// kernel: discrete_policy_forward.1
$region0: #{discrete_policy_forward.1}
  #allocation0 [shape = 'u32[]', space=smem, size = 0x4, offset = 0x4, fixed_abs, tag = 'smem constant byte address 0x4 - core index']
  #allocation1 [shape = 'u32[72,128]{1,0:T(1,128)}', space=vmem, size = 0x9000, scoped, tag = 'internal scratch']
  %s0 = inlined_call_operand.vmem [shape: f32[200,32], index: 0, kind: input, shape index: {}]
  %s1 = inlined_call_operand.vmem [shape: f32[32,128], index: 1, kind: input, shape index: {}]
  %s2 = inlined_call_operand.vmem [shape: f32[1,128], index: 2, kind: input, shape index: {}]
  %s3 = inlined_call_operand.vmem [shape: f32[128,128], index: 3, kind: input, shape index: {}]
  %s4 = inlined_call_operand.vmem [shape: f32[1,128], index: 4, kind: input, shape index: {}]
  %s5 = inlined_call_operand.vmem [shape: f32[200,128], index: 5, kind: output, shape index: {}]
  %s6 = sld [smem:[#allocation0]]
  $region101: #{discrete_policy_forward.1} parent=0
    _
  %s8 = ssub.s32 1, %s6
  %s9 = scalar_select 0, %s8, %s6
  $region1: #{discrete_policy_forward.1} parent=0
    #allocation2 [shape = 'u8[131072]{0}', space=vmem, size = 0x20000, scoped, tag = 'output window, operand 0']
    loop: start=0, step=1, limit=4
    $region2: #{discrete_policy_forward.1} parent=1 // loop_pre_header
      _
    $region3: #{discrete_policy_forward.1} parent=1 // loop_header
      %s11 = sphi 0, %s15
      %p12 = scmp.ge.s32.totalorder %s11, 4
      %s21 = sphi 0, %s23
      %s24 = sphi 0, %s21
      %s25 = sphi 0, %s24
      %s41 = sphi 0, %s25
      %s45 = sphi 0, %s45
      %s47 = sphi 0, %s45
      %s48 = sphi 0, %s47
      %s62 = sphi 0, %s48
      %s66 = sphi 0, %s66
      %s68 = sphi 0, %s66
      %s69 = sphi 0, %s68
      %s83 = sphi 0, %s69
      %s87 = sphi 0, %s87
      %s89 = sphi 0, %s87
      %s90 = sphi 0, %s89
      %s104 = sphi 0, %s90
      %s108 = sphi 0, %s108
      %s110 = sphi 0, %s108
      %s111 = sphi 0, %s110
      %s125 = sphi 0, %s111
      %s131 = sphi 0, %s133
      %s134 = sphi 0, %s131
      %s135 = sphi 0, %s134
      %s151 = sphi 0, %s135
    $region4: #{discrete_policy_forward.1} parent=1 // loop_header_branch
      %14 = sbr.rel (%p12) target = $region8
    $region5: #{discrete_policy_forward.1} parent=1 // loop_body
      %s16 = ssub.s32 %s11, 1
      %s17 = ssub.s32 %s11, 2
      %s18 = sadd.s32 %s11, 1
      %s19 = ssub.s32 %s11, %s18
      %p20 = scmp.eq.s32.totalorder %s19, 0
      %s22 = sadd.s32 %s21, 1
      %s23 = scalar_select %p20, %s21, %s22
      %p26 = pneg %p20
      %p27 = scmp.eq.s32.totalorder %s11, 1
      %p28 = por %p26, %p27
      %p29 = scmp.ne.s32.totalorder %s21, %s24
      %p30 = scmp.eq.s32.totalorder %s11, 0
      %p31 = por %p29, %p30
      %p32 = scmp.ne.s32.totalorder %s21, %s24
      %p33 = scmp.eq.s32.totalorder %s16, 1
      %p34 = por %p32, %p33
      %p35 = scmp.ne.s32.totalorder %s24, %s25
      %p36 = scmp.eq.s32.totalorder %s16, 0
      %p37 = por %p35, %p36
      %p38 = scmp.ne.s32.totalorder %s24, %s25
      %p39 = scmp.eq.s32.totalorder %s17, 1
      %p40 = por %p38, %p39
      %p42 = scmp.ne.s32.totalorder %s25, %s41
      %p43 = scmp.eq.s32.totalorder %s17, 0
      %p44 = por %p42, %p43
      %s46 = sadd.s32 %s45, 1
      %p49 = scmp.eq.s32.totalorder %s11, 1
      %p50 = scmp.ne.s32.totalorder %s45, %s47
      %p51 = scmp.eq.s32.totalorder %s11, 0
      %p52 = por %p50, %p51
      %p53 = scmp.ne.s32.totalorder %s45, %s47
      %p54 = scmp.eq.s32.totalorder %s16, 1
      %p55 = por %p53, %p54
      %p56 = scmp.ne.s32.totalorder %s47, %s48
      %p57 = scmp.eq.s32.totalorder %s16, 0
      %p58 = por %p56, %p57
      %p59 = scmp.ne.s32.totalorder %s47, %s48
      %p60 = scmp.eq.s32.totalorder %s17, 1
      %p61 = por %p59, %p60
      %p63 = scmp.ne.s32.totalorder %s48, %s62
      %p64 = scmp.eq.s32.totalorder %s17, 0
      %p65 = por %p63, %p64
      %s67 = sadd.s32 %s66, 1
      %p70 = scmp.eq.s32.totalorder %s11, 1
      %p71 = scmp.ne.s32.totalorder %s66, %s68
      %p72 = scmp.eq.s32.totalorder %s11, 0
      %p73 = por %p71, %p72
      %p74 = scmp.ne.s32.totalorder %s66, %s68
      %p75 = scmp.eq.s32.totalorder %s16, 1
      %p76 = por %p74, %p75
      %p77 = scmp.ne.s32.totalorder %s68, %s69
      %p78 = scmp.eq.s32.totalorder %s16, 0
      %p79 = por %p77, %p78
      %p80 = scmp.ne.s32.totalorder %s68, %s69
      %p81 = scmp.eq.s32.totalorder %s17, 1
      %p82 = por %p80, %p81
      %p84 = scmp.ne.s32.totalorder %s69, %s83
      %p85 = scmp.eq.s32.totalorder %s17, 0
      %p86 = por %p84, %p85
      %s88 = sadd.s32 %s87, 1
      %p91 = scmp.eq.s32.totalorder %s11, 1
      %p92 = scmp.ne.s32.totalorder %s87, %s89
      %p93 = scmp.eq.s32.totalorder %s11, 0
      %p94 = por %p92, %p93
      %p95 = scmp.ne.s32.totalorder %s87, %s89
      %p96 = scmp.eq.s32.totalorder %s16, 1
      %p97 = por %p95, %p96
      %p98 = scmp.ne.s32.totalorder %s89, %s90
      %p99 = scmp.eq.s32.totalorder %s16, 0
      %p100 = por %p98, %p99
      %p101 = scmp.ne.s32.totalorder %s89, %s90
      %p102 = scmp.eq.s32.totalorder %s17, 1
      %p103 = por %p101, %p102
      %p105 = scmp.ne.s32.totalorder %s90, %s104
      %p106 = scmp.eq.s32.totalorder %s17, 0
      %p107 = por %p105, %p106
      %s109 = sadd.s32 %s108, 1
      %p112 = scmp.eq.s32.totalorder %s11, 1
      %p113 = scmp.ne.s32.totalorder %s108, %s110
      %p114 = scmp.eq.s32.totalorder %s11, 0
      %p115 = por %p113, %p114
      %p116 = scmp.ne.s32.totalorder %s108, %s110
      %p117 = scmp.eq.s32.totalorder %s16, 1
      %p118 = por %p116, %p117
      %p119 = scmp.ne.s32.totalorder %s110, %s111
      %p120 = scmp.eq.s32.totalorder %s16, 0
      %p121 = por %p119, %p120
      %p122 = scmp.ne.s32.totalorder %s110, %s111
      %p123 = scmp.eq.s32.totalorder %s17, 1
      %p124 = por %p122, %p123
      %p126 = scmp.ne.s32.totalorder %s111, %s125
      %p127 = scmp.eq.s32.totalorder %s17, 0
      %p128 = por %p126, %p127
      %s129 = ssub.s32 %s11, %s18
      %p130 = scmp.eq.s32.totalorder %s129, 0
      %s132 = sadd.s32 %s131, 1
      %s133 = scalar_select %p130, %s131, %s132
      %p136 = pneg %p130
      %p137 = scmp.eq.s32.totalorder %s11, 1
      %p138 = por %p136, %p137
      %p139 = scmp.ne.s32.totalorder %s131, %s134
      %p140 = scmp.eq.s32.totalorder %s11, 0
      %p141 = por %p139, %p140
      %p142 = scmp.ne.s32.totalorder %s131, %s134
      %p143 = scmp.eq.s32.totalorder %s16, 1
      %p144 = por %p142, %p143
      %p145 = scmp.ne.s32.totalorder %s134, %s135
      %p146 = scmp.eq.s32.totalorder %s16, 0
      %p147 = por %p145, %p146
      %p148 = scmp.ne.s32.totalorder %s134, %s135
      %p149 = scmp.eq.s32.totalorder %s17, 1
      %p150 = por %p148, %p149
      %p152 = scmp.ne.s32.totalorder %s135, %s151
      %p153 = scmp.eq.s32.totalorder %s17, 0
      %p154 = por %p152, %p153
      %p155 = scmp.le.s32.totalorder 1, %s11
      %p156 = scmp.lt.s32.totalorder %s11, 3
      %p157 = pnand %p155, %p156
      %p158 = pneg %p157
      // Predicated region
      $region9: #{discrete_policy_forward.1} parent=5 // pred_check
        _
      $region10: #{discrete_policy_forward.1} parent=5 // pred_check_branch
        %160 = sbr.rel (%p157) target = $region12
      $region11: #{discrete_policy_forward.1} parent=5 // pred_region
        %s161 = ssub.s32 %s11, 1
        // Predicated region
        $region13: #{discrete_policy_forward.1} parent=11 // pred_check
          %p162 = pneg %p58
        $region14: #{discrete_policy_forward.1} parent=11 // pred_check_branch
          %164 = sbr.rel (%p162) target = $region16
        $region15: #{discrete_policy_forward.1} parent=11 // pred_region
          _
        $region16: #{discrete_policy_forward.1} parent=11 // pred_fallthru
          _
        // Predicated region
        $region17: #{discrete_policy_forward.1} parent=11 // pred_check
          %p165 = pneg %p79
        $region18: #{discrete_policy_forward.1} parent=11 // pred_check_branch
          %167 = sbr.rel (%p165) target = $region20
        $region19: #{discrete_policy_forward.1} parent=11 // pred_region
          _
        $region20: #{discrete_policy_forward.1} parent=11 // pred_fallthru
          _
        // Predicated region
        $region21: #{discrete_policy_forward.1} parent=11 // pred_check
          %p168 = pneg %p100
        $region22: #{discrete_policy_forward.1} parent=11 // pred_check_branch
          %170 = sbr.rel (%p168) target = $region24
        $region23: #{discrete_policy_forward.1} parent=11 // pred_region
          _
        $region24: #{discrete_policy_forward.1} parent=11 // pred_fallthru
          _
        // Predicated region
        $region25: #{discrete_policy_forward.1} parent=11 // pred_check
          %p171 = pneg %p121
        $region26: #{discrete_policy_forward.1} parent=11 // pred_check_branch
          %173 = sbr.rel (%p171) target = $region28
        $region27: #{discrete_policy_forward.1} parent=11 // pred_region
          _
        $region28: #{discrete_policy_forward.1} parent=11 // pred_fallthru
          _
      $region12: #{discrete_policy_forward.1} parent=5 // pred_fallthru
        _
      %p174 = scmp.lt.s32.totalorder %s11, 2
      // Predicated region
      $region29: #{discrete_policy_forward.1} parent=5 // pred_check
        %p175 = pneg %p174
      $region30: #{discrete_policy_forward.1} parent=5 // pred_check_branch
        %177 = sbr.rel (%p175) target = $region32
      $region31: #{discrete_policy_forward.1} parent=5 // pred_region
        // Predicated region
        $region33: #{discrete_policy_forward.1} parent=31 // pred_check
          %p178 = pneg %p31
        $region34: #{discrete_policy_forward.1} parent=31 // pred_check_branch
          %180 = sbr.rel (%p178) target = $region36
        $region35: #{discrete_policy_forward.1} parent=31 // pred_region
          %s181 = smul.u32 16, %s11
          %s182 = ssub.s32 25, %s181
          %p183 = scmp.lt.s32.totalorder %s182, 16
          %s184 = scalar_select %p183, %s182, 16
          %s185 = smul.u32 8, %s184
          %p186 = scmp.lt.s32.totalorder %s181, 24
          %s187 = scalar_select %p186, %s181, 24
          %s188 = smul.addr %s187, 8
          %s189 = scalar_lea.vmem %s0, %s188
          %s190 = smul.u32 16, %s11
          %s191 = ssub.s32 25, %s190
          %p192 = scmp.lt.s32.totalorder %s191, 16
          %s193 = scalar_select %p192, %s191, 16
          %s194 = smul.u32 8, %s193
        $region36: #{discrete_policy_forward.1} parent=31 // pred_fallthru
          _
      $region32: #{discrete_policy_forward.1} parent=5 // pred_fallthru
        _
      %p195 = scmp.le.s32.totalorder 1, %s11
      %p196 = scmp.lt.s32.totalorder %s11, 3
      %p197 = pnand %p195, %p196
      %p198 = pneg %p197
      // Predicated region
      $region37: #{discrete_policy_forward.1} parent=5 // pred_check
        _
      $region38: #{discrete_policy_forward.1} parent=5 // pred_check_branch
        %200 = sbr.rel (%p197) target = $region40
      $region39: #{discrete_policy_forward.1} parent=5 // pred_region
        %s201 = ssub.s32 %s11, 1
        %s202 = smul.u32 16, %s16
        %s203 = ssub.s32 25, %s202
        %p204 = scmp.lt.s32.totalorder %s203, 16
        %s205 = scalar_select %p204, %s203, 16
        %s206 = smul.u32 8, %s205
        %p207 = scmp.lt.s32.totalorder %s202, 24
        %s208 = scalar_select %p207, %s202, 24
        %s209 = smul.addr %s208, 8
        %s210 = scalar_lea.vmem %s0, %s209
        %p211 = pneg %p37
        %p212 = pneg %p34
        %p213 = pneg %p58
        %p214 = pneg %p55
        %p215 = pneg %p79
        %p216 = pneg %p76
        %p217 = pneg %p100
        %p218 = pneg %p97
        %p219 = pneg %p121
        %p220 = pneg %p118
        %p221 = pneg %p147
        %p222 = pneg %p144
        %s223 = sand.u32 %s134, 1
        %s224 = sand.u32 %s134, 1
        %s225 = smul.addr %s224, 128
        %s226 = scalar_lea.vmem [#allocation2], %s225
        %s227 = smul.u32 16, %s16
        %s228 = ssub.s32 25, %s227
        %p229 = scmp.lt.s32.totalorder %s228, 16
        %s230 = scalar_select %p229, %s228, 16
        %s231 = smul.u32 8, %s230
        %p232 = scmp.lt.s32.totalorder %s227, 24
        %s233 = scalar_select %p232, %s227, 24
        %s234 = smul.addr %s233, 8
        %s235 = scalar_lea.vmem %s0, %s234
        %s236 = smul.u32 16, %s16
        %s237 = ssub.s32 25, %s236
        %p238 = scmp.lt.s32.totalorder %s237, 16
        %s239 = scalar_select %p238, %s237, 16
        %s240 = smul.u32 8, %s239
        %s241 = smul.u32 16, %s16
        %s242 = ssub.s32 25, %s241
        %p243 = scmp.lt.s32.totalorder %s242, 16
        %s244 = scalar_select %p243, %s242, 16
        %s245 = smul.u32 8, %s244
        %v246 = vld [vmem:[%s235] sm:$0xff]
        %v247 = vld [vmem:[%s235 + $0x8] sm:$0xff]
        %v248 = vld [vmem:[%s235 + $0x10] sm:$0xff]
        %v249 = vld [vmem:[%s235 + $0x18] sm:$0xff]
        %v250 = vld [vmem:[%s235 + $0x20] sm:$0xff]
        %v251 = vld [vmem:[%s235 + $0x28] sm:$0xff]
        %v252 = vld [vmem:[%s235 + $0x30] sm:$0xff]
        %v253 = vld [vmem:[%s235 + $0x38] sm:$0xff]
        %v254 = vld [vmem:[%s235 + $0x40] sm:$0xff]
        %v255 = vld [vmem:[%s235 + $0x48] sm:$0xff]
        %v256 = vld [vmem:[%s235 + $0x50] sm:$0xff]
        %v257 = vld [vmem:[%s235 + $0x58] sm:$0xff]
        %v258 = vld [vmem:[%s235 + $0x60] sm:$0xff]
        %v259 = vld [vmem:[%s235 + $0x68] sm:$0xff]
        %v260 = vld [vmem:[%s235 + $0x70] sm:$0xff]
        %v261 = vld [vmem:[%s235 + $0x78] sm:$0xff]
        %v262 = vld [vmem:[%s1] sm:$0xff]
        %v263 = vld [vmem:[%s1 + $0x8] sm:$0xff]
        %v264 = vld [vmem:[%s1 + $0x10] sm:$0xff]
        %v265 = vld [vmem:[%s1 + $0x18] sm:$0xff]
        %v266 = vld [vmem:[%s2] sm:$0x1]
        %v268 = vperm.slane %v266, 0
        %vm270 = vcmask 261120
        %v272 = vsel %vm270, %v246, 0
        %v275 = vsel %vm270, %v247, 0
        %v278 = vsel %vm270, %v248, 0
        %v281 = vsel %vm270, %v249, 0
        %v284 = vsel %vm270, %v250, 0
        %v287 = vsel %vm270, %v251, 0
        %v290 = vsel %vm270, %v252, 0
        %v293 = vsel %vm270, %v253, 0
        %v296 = vsel %vm270, %v254, 0
        %v299 = vsel %vm270, %v255, 0
        %v302 = vsel %vm270, %v256, 0
        %v305 = vsel %vm270, %v257, 0
        %v308 = vsel %vm270, %v258, 0
        %v311 = vsel %vm270, %v259, 0
        %v314 = vsel %vm270, %v260, 0
        %v317 = vsel %vm270, %v261, 0
        %319 = vmatpush.msra.mxu0 0.0
        %320 = vmatpush.msra.mxu0 0.0
        %321 = vmatpush.msra.mxu0 0.0
        %322 = vmatpush.msra.mxu0 0.0
        %323 = vmatpush.msra.mxu0 0.0
        %324 = vmatpush.msra.mxu0 0.0
        %325 = vmatpush.msra.mxu0 0.0
        %326 = vmatpush.msra.mxu0 0.0
        %327 = vmatpush.msra.mxu0 0.0
        %328 = vmatpush.msra.mxu0 0.0
        %329 = vmatpush.msra.mxu0 0.0
        %330 = vmatpush.msra.mxu0 0.0
        %331 = vmatpush.msra.mxu0 %v265
        %332 = vmatpush.msra.mxu0 %v264
        %333 = vmatpush.msra.mxu0 %v263
        %334 = vmatpush.msra.mxu0 %v262
        %335 = vmatmul.f32.gmra.mxu0 %v272
        %v336 = vpop.f32.mrf.mxu0
        %v337 = vadd.f32 %v268, %v336
        %338 = vmatmul.f32.gmra.mxu0 %v275
        %v339 = vpop.f32.mrf.mxu0
        %v340 = vadd.f32 %v268, %v339
        %341 = vmatmul.f32.gmra.mxu0 %v278
        %v342 = vpop.f32.mrf.mxu0
        %v343 = vadd.f32 %v268, %v342
        %344 = vmatmul.f32.gmra.mxu0 %v281
        %v345 = vpop.f32.mrf.mxu0
        %v346 = vadd.f32 %v268, %v345
        %347 = vmatmul.f32.gmra.mxu0 %v284
        %v348 = vpop.f32.mrf.mxu0
        %v349 = vadd.f32 %v268, %v348
        %350 = vmatmul.f32.gmra.mxu0 %v287
        %v351 = vpop.f32.mrf.mxu0
        %v352 = vadd.f32 %v268, %v351
        %353 = vmatmul.f32.gmra.mxu0 %v290
        %v354 = vpop.f32.mrf.mxu0
        %v355 = vadd.f32 %v268, %v354
        %356 = vmatmul.f32.gmra.mxu0 %v293
        %v357 = vpop.f32.mrf.mxu0
        %v358 = vadd.f32 %v268, %v357
        %359 = vmatmul.f32.gmra.mxu0 %v296
        %v360 = vpop.f32.mrf.mxu0
        %v361 = vadd.f32 %v268, %v360
        %362 = vmatmul.f32.gmra.mxu0 %v299
        %v363 = vpop.f32.mrf.mxu0
        %v364 = vadd.f32 %v268, %v363
        %365 = vmatmul.f32.gmra.mxu0 %v302
        %v366 = vpop.f32.mrf.mxu0
        %v367 = vadd.f32 %v268, %v366
        %368 = vmatmul.f32.gmra.mxu0 %v305
        %v369 = vpop.f32.mrf.mxu0
        %v370 = vadd.f32 %v268, %v369
        %371 = vmatmul.f32.gmra.mxu0 %v308
        %v372 = vpop.f32.mrf.mxu0
        %v373 = vadd.f32 %v268, %v372
        %374 = vmatmul.f32.gmra.mxu0 %v311
        %v375 = vpop.f32.mrf.mxu0
        %v376 = vadd.f32 %v268, %v375
        %377 = vmatmul.f32.gmra.mxu0 %v314
        %v378 = vpop.f32.mrf.mxu0
        %v379 = vadd.f32 %v268, %v378
        %380 = vmatmul.f32.gmra.mxu0 %v317
        %v381 = vpop.f32.mrf.mxu0
        %v382 = vadd.f32 %v268, %v381
        %383 = vdwg.mxu0
        %v384 = vmax.f32 %v337, 0.0
        %v385 = vmax.f32 %v340, 0.0
        %v386 = vmax.f32 %v343, 0.0
        %v387 = vmax.f32 %v346, 0.0
        %v388 = vmax.f32 %v349, 0.0
        %v389 = vmax.f32 %v352, 0.0
        %v390 = vmax.f32 %v355, 0.0
        %v391 = vmax.f32 %v358, 0.0
        %v392 = vmax.f32 %v361, 0.0
        %v393 = vmax.f32 %v364, 0.0
        %v394 = vmax.f32 %v367, 0.0
        %v395 = vmax.f32 %v370, 0.0
        %v396 = vmax.f32 %v373, 0.0
        %v397 = vmax.f32 %v376, 0.0
        %v398 = vmax.f32 %v379, 0.0
        %v399 = vmax.f32 %v382, 0.0
        %v400 = vld [vmem:[%s3] sm:$0xff]
        %v401 = vld [vmem:[%s3 + $0x8] sm:$0xff]
        %v402 = vld [vmem:[%s3 + $0x10] sm:$0xff]
        %v403 = vld [vmem:[%s3 + $0x18] sm:$0xff]
        %v404 = vld [vmem:[%s3 + $0x20] sm:$0xff]
        %v405 = vld [vmem:[%s3 + $0x28] sm:$0xff]
        %v406 = vld [vmem:[%s3 + $0x30] sm:$0xff]
        %v407 = vld [vmem:[%s3 + $0x38] sm:$0xff]
        %v408 = vld [vmem:[%s3 + $0x40] sm:$0xff]
        %v409 = vld [vmem:[%s3 + $0x48] sm:$0xff]
        %v410 = vld [vmem:[%s3 + $0x50] sm:$0xff]
        %v411 = vld [vmem:[%s3 + $0x58] sm:$0xff]
        %v412 = vld [vmem:[%s3 + $0x60] sm:$0xff]
        %v413 = vld [vmem:[%s3 + $0x68] sm:$0xff]
        %v414 = vld [vmem:[%s3 + $0x70] sm:$0xff]
        %v415 = vld [vmem:[%s3 + $0x78] sm:$0xff]
        %v416 = vld [vmem:[%s4] sm:$0x1]
        %v418 = vperm.slane %v416, 0
        %420 = vmatpush.msra.mxu0 %v415
        %421 = vmatpush.msra.mxu0 %v414
        %422 = vmatpush.msra.mxu0 %v413
        %423 = vmatpush.msra.mxu0 %v412
        %424 = vmatpush.msra.mxu0 %v411
        %425 = vmatpush.msra.mxu0 %v410
        %426 = vmatpush.msra.mxu0 %v409
        %427 = vmatpush.msra.mxu0 %v408
        %428 = vmatpush.msra.mxu0 %v407
        %429 = vmatpush.msra.mxu0 %v406
        %430 = vmatpush.msra.mxu0 %v405
        %431 = vmatpush.msra.mxu0 %v404
        %432 = vmatpush.msra.mxu0 %v403
        %433 = vmatpush.msra.mxu0 %v402
        %434 = vmatpush.msra.mxu0 %v401
        %435 = vmatpush.msra.mxu0 %v400
        %436 = vmatmul.f32.gmra.mxu0 %v384
        %v437 = vpop.f32.mrf.mxu0
        %v438 = vadd.f32 %v418, %v437
        %439 = vmatmul.f32.gmra.mxu0 %v385
        %v440 = vpop.f32.mrf.mxu0
        %v441 = vadd.f32 %v418, %v440
        %442 = vmatmul.f32.gmra.mxu0 %v386
        %v443 = vpop.f32.mrf.mxu0
        %v444 = vadd.f32 %v418, %v443
        %445 = vmatmul.f32.gmra.mxu0 %v387
        %v446 = vpop.f32.mrf.mxu0
        %v447 = vadd.f32 %v418, %v446
        %448 = vmatmul.f32.gmra.mxu0 %v388
        %v449 = vpop.f32.mrf.mxu0
        %v450 = vadd.f32 %v418, %v449
        %451 = vmatmul.f32.gmra.mxu0 %v389
        %v452 = vpop.f32.mrf.mxu0
        %v453 = vadd.f32 %v418, %v452
        %454 = vmatmul.f32.gmra.mxu0 %v390
        %v455 = vpop.f32.mrf.mxu0
        %v456 = vadd.f32 %v418, %v455
        %457 = vmatmul.f32.gmra.mxu0 %v391
        %v458 = vpop.f32.mrf.mxu0
        %v459 = vadd.f32 %v418, %v458
        %460 = vmatmul.f32.gmra.mxu0 %v392
        %v461 = vpop.f32.mrf.mxu0
        %v462 = vadd.f32 %v418, %v461
        %463 = vmatmul.f32.gmra.mxu0 %v393
        %v464 = vpop.f32.mrf.mxu0
        %v465 = vadd.f32 %v418, %v464
        %466 = vmatmul.f32.gmra.mxu0 %v394
        %v467 = vpop.f32.mrf.mxu0
        %v468 = vadd.f32 %v418, %v467
        %469 = vmatmul.f32.gmra.mxu0 %v395
        %v470 = vpop.f32.mrf.mxu0
        %v471 = vadd.f32 %v418, %v470
        %472 = vmatmul.f32.gmra.mxu0 %v396
        %v473 = vpop.f32.mrf.mxu0
        %v474 = vadd.f32 %v418, %v473
        %475 = vmatmul.f32.gmra.mxu0 %v397
        %v476 = vpop.f32.mrf.mxu0
        %v477 = vadd.f32 %v418, %v476
        %478 = vmatmul.f32.gmra.mxu0 %v398
        %v479 = vpop.f32.mrf.mxu0
        %v480 = vadd.f32 %v418, %v479
        %481 = vmatmul.f32.gmra.mxu0 %v399
        %v482 = vpop.f32.mrf.mxu0
        %v483 = vadd.f32 %v418, %v482
        %484 = vdwg.mxu0
        %485 = vmax.xlane.f32.xlu0 %v438
        %v486 = vpop.xlane.xlu0 %485
        %487 = vmax.xlane.f32.xlu0 %v441
        %v488 = vpop.xlane.xlu0 %487
        %489 = vmax.xlane.f32.xlu0 %v444
        %v490 = vpop.xlane.xlu0 %489
        %491 = vmax.xlane.f32.xlu0 %v447
        %v492 = vpop.xlane.xlu0 %491
        %493 = vmax.xlane.f32.xlu0 %v450
        %v494 = vpop.xlane.xlu0 %493
        %495 = vmax.xlane.f32.xlu0 %v453
        %v496 = vpop.xlane.xlu0 %495
        %497 = vmax.xlane.f32.xlu0 %v456
        %v498 = vpop.xlane.xlu0 %497
        %499 = vmax.xlane.f32.xlu0 %v459
        %v500 = vpop.xlane.xlu0 %499
        %501 = vmax.xlane.f32.xlu0 %v462
        %v502 = vpop.xlane.xlu0 %501
        %503 = vmax.xlane.f32.xlu0 %v465
        %v504 = vpop.xlane.xlu0 %503
        %505 = vmax.xlane.f32.xlu0 %v468
        %v506 = vpop.xlane.xlu0 %505
        %507 = vmax.xlane.f32.xlu0 %v471
        %v508 = vpop.xlane.xlu0 %507
        %509 = vmax.xlane.f32.xlu0 %v474
        %v510 = vpop.xlane.xlu0 %509
        %511 = vmax.xlane.f32.xlu0 %v477
        %v512 = vpop.xlane.xlu0 %511
        %513 = vmax.xlane.f32.xlu0 %v480
        %v514 = vpop.xlane.xlu0 %513
        %515 = vmax.xlane.f32.xlu0 %v483
        %v516 = vpop.xlane.xlu0 %515
        %v517 = vsub.f32 %v438, %v486
        %v518 = vsub.f32 %v441, %v488
        %v519 = vsub.f32 %v444, %v490
        %v520 = vsub.f32 %v447, %v492
        %v521 = vsub.f32 %v450, %v494
        %v522 = vsub.f32 %v453, %v496
        %v523 = vsub.f32 %v456, %v498
        %v524 = vsub.f32 %v459, %v500
        %v525 = vsub.f32 %v462, %v502
        %v526 = vsub.f32 %v465, %v504
        %v527 = vsub.f32 %v468, %v506
        %v528 = vsub.f32 %v471, %v508
        %v529 = vsub.f32 %v474, %v510
        %v530 = vsub.f32 %v477, %v512
        %v531 = vsub.f32 %v480, %v514
        %v532 = vsub.f32 %v483, %v516
        %v533 = vmul.f32 %v517, 1.442695
        %v534 = vpow.pop %v533
        %v535 = vmul.f32 %v518, 1.442695
        %v536 = vpow.pop %v535
        %v537 = vmul.f32 %v519, 1.442695
        %v538 = vpow.pop %v537
        %v539 = vmul.f32 %v520, 1.442695
        %v540 = vpow.pop %v539
        %v541 = vmul.f32 %v521, 1.442695
        %v542 = vpow.pop %v541
        %v543 = vmul.f32 %v522, 1.442695
        %v544 = vpow.pop %v543
        %v545 = vmul.f32 %v523, 1.442695
        %v546 = vpow.pop %v545
        %v547 = vmul.f32 %v524, 1.442695
        %v548 = vpow.pop %v547
        %v549 = vmul.f32 %v525, 1.442695
        %v550 = vpow.pop %v549
        %v551 = vmul.f32 %v526, 1.442695
        %v552 = vpow.pop %v551
        %v553 = vmul.f32 %v527, 1.442695
        %v554 = vpow.pop %v553
        %v555 = vmul.f32 %v528, 1.442695
        %v556 = vpow.pop %v555
        %v557 = vmul.f32 %v529, 1.442695
        %v558 = vpow.pop %v557
        %v559 = vmul.f32 %v530, 1.442695
        %v560 = vpow.pop %v559
        %v561 = vmul.f32 %v531, 1.442695
        %v562 = vpow.pop %v561
        %v563 = vmul.f32 %v532, 1.442695
        %v564 = vpow.pop %v563
        %565 = vadd.xlane.f32.xlu0 %v534
        %v566 = vpop.xlane.xlu0 %565
        %567 = vadd.xlane.f32.xlu0 %v536
        %v568 = vpop.xlane.xlu0 %567
        %569 = vadd.xlane.f32.xlu0 %v538
        %v570 = vpop.xlane.xlu0 %569
        %571 = vadd.xlane.f32.xlu0 %v540
        %v572 = vpop.xlane.xlu0 %571
        %573 = vadd.xlane.f32.xlu0 %v542
        %v574 = vpop.xlane.xlu0 %573
        %575 = vadd.xlane.f32.xlu0 %v544
        %v576 = vpop.xlane.xlu0 %575
        %577 = vadd.xlane.f32.xlu0 %v546
        %v578 = vpop.xlane.xlu0 %577
        %579 = vadd.xlane.f32.xlu0 %v548
        %v580 = vpop.xlane.xlu0 %579
        %581 = vadd.xlane.f32.xlu0 %v550
        %v582 = vpop.xlane.xlu0 %581
        %583 = vadd.xlane.f32.xlu0 %v552
        %v584 = vpop.xlane.xlu0 %583
        %585 = vadd.xlane.f32.xlu0 %v554
        %v586 = vpop.xlane.xlu0 %585
        %587 = vadd.xlane.f32.xlu0 %v556
        %v588 = vpop.xlane.xlu0 %587
        %589 = vadd.xlane.f32.xlu0 %v558
        %v590 = vpop.xlane.xlu0 %589
        %591 = vadd.xlane.f32.xlu0 %v560
        %v592 = vpop.xlane.xlu0 %591
        %593 = vadd.xlane.f32.xlu0 %v562
        %v594 = vpop.xlane.xlu0 %593
        %595 = vadd.xlane.f32.xlu0 %v564
        %v596 = vpop.xlane.xlu0 %595
        %v597 = vrcp.pop %v566
        %v598 = vmul.f32 %v566, %v597
        %v599 = vsub.f32 1.0, %v598
        %v600 = vmul.f32 %v597, %v599
        %v601 = vadd.f32 %v597, %v600
        %vm602 = vweird.f32 %v566
        %vm603 = vweird.f32 %v597
        %vm604 = vmor %vm602, %vm603
        %v605 = vsel %vm604, %v597, %v601
        %v606 = vand.u32 2147483647, %v566
        %vm607 = vcmp.eq.f32.partialorder %v606, 8.507059e+37
        %v608 = vand.u32 %v566, 2147483648
        %v609 = vor.u32 1.1754944e-38, %v608
        %v610 = vsel %vm607, %v609, %v605
        %v611 = vrcp.pop %v568
        %v612 = vmul.f32 %v568, %v611
        %v613 = vsub.f32 1.0, %v612
        %v614 = vmul.f32 %v611, %v613
        %v615 = vadd.f32 %v611, %v614
        %vm616 = vweird.f32 %v568
        %vm617 = vweird.f32 %v611
        %vm618 = vmor %vm616, %vm617
        %v619 = vsel %vm618, %v611, %v615
        %v620 = vand.u32 2147483647, %v568
        %vm621 = vcmp.eq.f32.partialorder %v620, 8.507059e+37
        %v622 = vand.u32 %v568, 2147483648
        %v623 = vor.u32 1.1754944e-38, %v622
        %v624 = vsel %vm621, %v623, %v619
        %v625 = vrcp.pop %v570
        %v626 = vmul.f32 %v570, %v625
        %v627 = vsub.f32 1.0, %v626
        %v628 = vmul.f32 %v625, %v627
        %v629 = vadd.f32 %v625, %v628
        %vm630 = vweird.f32 %v570
        %vm631 = vweird.f32 %v625
        %vm632 = vmor %vm630, %vm631
        %v633 = vsel %vm632, %v625, %v629
        %v634 = vand.u32 2147483647, %v570
        %vm635 = vcmp.eq.f32.partialorder %v634, 8.507059e+37
        %v636 = vand.u32 %v570, 2147483648
        %v637 = vor.u32 1.1754944e-38, %v636
        %v638 = vsel %vm635, %v637, %v633
        %v639 = vrcp.pop %v572
        %v640 = vmul.f32 %v572, %v639
        %v641 = vsub.f32 1.0, %v640
        %v642 = vmul.f32 %v639, %v641
        %v643 = vadd.f32 %v639, %v642
        %vm644 = vweird.f32 %v572
        %vm645 = vweird.f32 %v639
        %vm646 = vmor %vm644, %vm645
        %v647 = vsel %vm646, %v639, %v643
        %v648 = vand.u32 2147483647, %v572
        %vm649 = vcmp.eq.f32.partialorder %v648, 8.507059e+37
        %v650 = vand.u32 %v572, 2147483648
        %v651 = vor.u32 1.1754944e-38, %v650
        %v652 = vsel %vm649, %v651, %v647
        %v653 = vrcp.pop %v574
        %v654 = vmul.f32 %v574, %v653
        %v655 = vsub.f32 1.0, %v654
        %v656 = vmul.f32 %v653, %v655
        %v657 = vadd.f32 %v653, %v656
        %vm658 = vweird.f32 %v574
        %vm659 = vweird.f32 %v653
        %vm660 = vmor %vm658, %vm659
        %v661 = vsel %vm660, %v653, %v657
        %v662 = vand.u32 2147483647, %v574
        %vm663 = vcmp.eq.f32.partialorder %v662, 8.507059e+37
        %v664 = vand.u32 %v574, 2147483648
        %v665 = vor.u32 1.1754944e-38, %v664
        %v666 = vsel %vm663, %v665, %v661
        %v667 = vrcp.pop %v576
        %v668 = vmul.f32 %v576, %v667
        %v669 = vsub.f32 1.0, %v668
        %v670 = vmul.f32 %v667, %v669
        %v671 = vadd.f32 %v667, %v670
        %vm672 = vweird.f32 %v576
        %vm673 = vweird.f32 %v667
        %vm674 = vmor %vm672, %vm673
        %v675 = vsel %vm674, %v667, %v671
        %v676 = vand.u32 2147483647, %v576
        %vm677 = vcmp.eq.f32.partialorder %v676, 8.507059e+37
        %v678 = vand.u32 %v576, 2147483648
        %v679 = vor.u32 1.1754944e-38, %v678
        %v680 = vsel %vm677, %v679, %v675
        %v681 = vrcp.pop %v578
        %v682 = vmul.f32 %v578, %v681
        %v683 = vsub.f32 1.0, %v682
        %v684 = vmul.f32 %v681, %v683
        %v685 = vadd.f32 %v681, %v684
        %vm686 = vweird.f32 %v578
        %vm687 = vweird.f32 %v681
        %vm688 = vmor %vm686, %vm687
        %v689 = vsel %vm688, %v681, %v685
        %v690 = vand.u32 2147483647, %v578
        %vm691 = vcmp.eq.f32.partialorder %v690, 8.507059e+37
        %v692 = vand.u32 %v578, 2147483648
        %v693 = vor.u32 1.1754944e-38, %v692
        %v694 = vsel %vm691, %v693, %v689
        %v695 = vrcp.pop %v580
        %v696 = vmul.f32 %v580, %v695
        %v697 = vsub.f32 1.0, %v696
        %v698 = vmul.f32 %v695, %v697
        %v699 = vadd.f32 %v695, %v698
        %vm700 = vweird.f32 %v580
        %vm701 = vweird.f32 %v695
        %vm702 = vmor %vm700, %vm701
        %v703 = vsel %vm702, %v695, %v699
        %v704 = vand.u32 2147483647, %v580
        %vm705 = vcmp.eq.f32.partialorder %v704, 8.507059e+37
        %v706 = vand.u32 %v580, 2147483648
        %v707 = vor.u32 1.1754944e-38, %v706
        %v708 = vsel %vm705, %v707, %v703
        %v709 = vrcp.pop %v582
        %v710 = vmul.f32 %v582, %v709
        %v711 = vsub.f32 1.0, %v710
        %v712 = vmul.f32 %v709, %v711
        %v713 = vadd.f32 %v709, %v712
        %vm714 = vweird.f32 %v582
        %vm715 = vweird.f32 %v709
        %vm716 = vmor %vm714, %vm715
        %v717 = vsel %vm716, %v709, %v713
        %v718 = vand.u32 2147483647, %v582
        %vm719 = vcmp.eq.f32.partialorder %v718, 8.507059e+37
        %v720 = vand.u32 %v582, 2147483648
        %v721 = vor.u32 1.1754944e-38, %v720
        %v722 = vsel %vm719, %v721, %v717
        %v723 = vrcp.pop %v584
        %v724 = vmul.f32 %v584, %v723
        %v725 = vsub.f32 1.0, %v724
        %v726 = vmul.f32 %v723, %v725
        %v727 = vadd.f32 %v723, %v726
        %vm728 = vweird.f32 %v584
        %vm729 = vweird.f32 %v723
        %vm730 = vmor %vm728, %vm729
        %v731 = vsel %vm730, %v723, %v727
        %v732 = vand.u32 2147483647, %v584
        %vm733 = vcmp.eq.f32.partialorder %v732, 8.507059e+37
        %v734 = vand.u32 %v584, 2147483648
        %v735 = vor.u32 1.1754944e-38, %v734
        %v736 = vsel %vm733, %v735, %v731
        %v737 = vrcp.pop %v586
        %v738 = vmul.f32 %v586, %v737
        %v739 = vsub.f32 1.0, %v738
        %v740 = vmul.f32 %v737, %v739
        %v741 = vadd.f32 %v737, %v740
        %vm742 = vweird.f32 %v586
        %vm743 = vweird.f32 %v737
        %vm744 = vmor %vm742, %vm743
        %v745 = vsel %vm744, %v737, %v741
        %v746 = vand.u32 2147483647, %v586
        %vm747 = vcmp.eq.f32.partialorder %v746, 8.507059e+37
        %v748 = vand.u32 %v586, 2147483648
        %v749 = vor.u32 1.1754944e-38, %v748
        %v750 = vsel %vm747, %v749, %v745
        %v751 = vrcp.pop %v588
        %v752 = vmul.f32 %v588, %v751
        %v753 = vsub.f32 1.0, %v752
        %v754 = vmul.f32 %v751, %v753
        %v755 = vadd.f32 %v751, %v754
        %vm756 = vweird.f32 %v588
        %vm757 = vweird.f32 %v751
        %vm758 = vmor %vm756, %vm757
        %v759 = vsel %vm758, %v751, %v755
        %v760 = vand.u32 2147483647, %v588
        %vm761 = vcmp.eq.f32.partialorder %v760, 8.507059e+37
        %v762 = vand.u32 %v588, 2147483648
        %v763 = vor.u32 1.1754944e-38, %v762
        %v764 = vsel %vm761, %v763, %v759
        %v765 = vrcp.pop %v590
        %v766 = vmul.f32 %v590, %v765
        %v767 = vsub.f32 1.0, %v766
        %v768 = vmul.f32 %v765, %v767
        %v769 = vadd.f32 %v765, %v768
        %vm770 = vweird.f32 %v590
        %vm771 = vweird.f32 %v765
        %vm772 = vmor %vm770, %vm771
        %v773 = vsel %vm772, %v765, %v769
        %v774 = vand.u32 2147483647, %v590
        %vm775 = vcmp.eq.f32.partialorder %v774, 8.507059e+37
        %v776 = vand.u32 %v590, 2147483648
        %v777 = vor.u32 1.1754944e-38, %v776
        %v778 = vsel %vm775, %v777, %v773
        %v779 = vrcp.pop %v592
        %v780 = vmul.f32 %v592, %v779
        %v781 = vsub.f32 1.0, %v780
        %v782 = vmul.f32 %v779, %v781
        %v783 = vadd.f32 %v779, %v782
        %vm784 = vweird.f32 %v592
        %vm785 = vweird.f32 %v779
        %vm786 = vmor %vm784, %vm785
        %v787 = vsel %vm786, %v779, %v783
        %v788 = vand.u32 2147483647, %v592
        %vm789 = vcmp.eq.f32.partialorder %v788, 8.507059e+37
        %v790 = vand.u32 %v592, 2147483648
        %v791 = vor.u32 1.1754944e-38, %v790
        %v792 = vsel %vm789, %v791, %v787
        %v793 = vrcp.pop %v594
        %v794 = vmul.f32 %v594, %v793
        %v795 = vsub.f32 1.0, %v794
        %v796 = vmul.f32 %v793, %v795
        %v797 = vadd.f32 %v793, %v796
        %vm798 = vweird.f32 %v594
        %vm799 = vweird.f32 %v793
        %vm800 = vmor %vm798, %vm799
        %v801 = vsel %vm800, %v793, %v797
        %v802 = vand.u32 2147483647, %v594
        %vm803 = vcmp.eq.f32.partialorder %v802, 8.507059e+37
        %v804 = vand.u32 %v594, 2147483648
        %v805 = vor.u32 1.1754944e-38, %v804
        %v806 = vsel %vm803, %v805, %v801
        %v807 = vrcp.pop %v596
        %v808 = vmul.f32 %v596, %v807
        %v809 = vsub.f32 1.0, %v808
        %v810 = vmul.f32 %v807, %v809
        %v811 = vadd.f32 %v807, %v810
        %vm812 = vweird.f32 %v596
        %vm813 = vweird.f32 %v807
        %vm814 = vmor %vm812, %vm813
        %v815 = vsel %vm814, %v807, %v811
        %v816 = vand.u32 2147483647, %v596
        %vm817 = vcmp.eq.f32.partialorder %v816, 8.507059e+37
        %v818 = vand.u32 %v596, 2147483648
        %v819 = vor.u32 1.1754944e-38, %v818
        %v820 = vsel %vm817, %v819, %v815
        %v821 = vmul.f32 %v534, %v610
        %v822 = vmul.f32 %v536, %v624
        %v823 = vmul.f32 %v538, %v638
        %v824 = vmul.f32 %v540, %v652
        %v825 = vmul.f32 %v542, %v666
        %v826 = vmul.f32 %v544, %v680
        %v827 = vmul.f32 %v546, %v694
        %v828 = vmul.f32 %v548, %v708
        %v829 = vmul.f32 %v550, %v722
        %v830 = vmul.f32 %v552, %v736
        %v831 = vmul.f32 %v554, %v750
        %v832 = vmul.f32 %v556, %v764
        %v833 = vmul.f32 %v558, %v778
        %v834 = vmul.f32 %v560, %v792
        %v835 = vmul.f32 %v562, %v806
        %v836 = vmul.f32 %v564, %v820
        %837 = vst [vmem:[%s226] sm:$0xff] %v821
        %838 = vst [vmem:[%s226 + $0x8] sm:$0xff] %v822
        %839 = vst [vmem:[%s226 + $0x10] sm:$0xff] %v823
        %840 = vst [vmem:[%s226 + $0x18] sm:$0xff] %v824
        %841 = vst [vmem:[%s226 + $0x20] sm:$0xff] %v825
        %842 = vst [vmem:[%s226 + $0x28] sm:$0xff] %v826
        %843 = vst [vmem:[%s226 + $0x30] sm:$0xff] %v827
        %844 = vst [vmem:[%s226 + $0x38] sm:$0xff] %v828
        %845 = vst [vmem:[%s226 + $0x40] sm:$0xff] %v829
        %846 = vst [vmem:[%s226 + $0x48] sm:$0xff] %v830
        %847 = vst [vmem:[%s226 + $0x50] sm:$0xff] %v831
        %848 = vst [vmem:[%s226 + $0x58] sm:$0xff] %v832
        %849 = vst [vmem:[%s226 + $0x60] sm:$0xff] %v833
        %850 = vst [vmem:[%s226 + $0x68] sm:$0xff] %v834
        %851 = vst [vmem:[%s226 + $0x70] sm:$0xff] %v835
        %852 = vst [vmem:[%s226 + $0x78] sm:$0xff] %v836
        %s853 = sand.u32 %s134, 1
        %s854 = sand.u32 %s134, 1
        %s855 = smul.addr %s854, 128
        %s856 = scalar_lea.vmem [#allocation2], %s855
        // Predicated region
        $region41: #{discrete_policy_forward.1} parent=39 // pred_check
          %p857 = pneg %p144
        $region42: #{discrete_policy_forward.1} parent=39 // pred_check_branch
          %859 = sbr.rel (%p857) target = $region44
        $region43: #{discrete_policy_forward.1} parent=39 // pred_region
          %s860 = smul.u32 16, %s16
          %s861 = ssub.s32 25, %s860
          %p862 = scmp.lt.s32.totalorder %s861, 16
          %s863 = scalar_select %p862, %s861, 16
          %s864 = smul.u32 8, %s863
          %p865 = scmp.ne.s32.totalorder 0, %s864
          %s866 = smul.addr %s860, 8
          %s867 = scalar_lea.vmem %s5, %s866
          // Predicated region
          $region45: #{discrete_policy_forward.1} parent=43 // pred_check
            %p868 = pneg %p865
          $region46: #{discrete_policy_forward.1} parent=43 // pred_check_branch
            %870 = sbr.rel (%p868) target = $region48
          $region47: #{discrete_policy_forward.1} parent=43 // pred_region
            // Predicated region
            $region49: #{discrete_policy_forward.1} parent=47 // pred_check
              _
            $region50: #{discrete_policy_forward.1} parent=47 // pred_check_branch
              %872 = sbr.rel (0) target = $region52
            $region51: #{discrete_policy_forward.1} parent=47 // pred_region
              // Predicated region
              $region71: #{discrete_policy_forward.1} parent=51 // pred_check
                _
              $region72: #{discrete_policy_forward.1} parent=51 // pred_check_branch
                %952 = sbr.rel (0) target = $region74
              $region73: #{discrete_policy_forward.1} parent=51 // pred_region
                %s953 = sshrl.u32 %s863, 4
                // While loop
                $region75: #{discrete_policy_forward.1} parent=73 // loop_pre_header
                  _
                $region76: #{discrete_policy_forward.1} parent=73 // loop_header
                  %s955 = sphi 0, %s957
                  %p956 = scmp.ge.s32.totalorder %s955, %s953
                  %s960 = sphi 0, %s997
                  %s961 = sphi %s856, %s1000
                  %s962 = sphi %s867, %s1001
                $region77: #{discrete_policy_forward.1} parent=73 // loop_header_branch
                  %959 = sbr.rel (%p956) target = $region81
                $region78: #{discrete_policy_forward.1} parent=73 // loop_body
                  %v963 = vld [vmem:[%s961] sm:$0xff]
                  %964 = vst [vmem:[%s962] sm:$0xff] %v963
                  %v965 = vld [vmem:[%s961 + $0x8] sm:$0xff]
                  %966 = vst [vmem:[%s962 + $0x8] sm:$0xff] %v965
                  %v967 = vld [vmem:[%s961 + $0x10] sm:$0xff]
                  %968 = vst [vmem:[%s962 + $0x10] sm:$0xff] %v967
                  %v969 = vld [vmem:[%s961 + $0x18] sm:$0xff]
                  %970 = vst [vmem:[%s962 + $0x18] sm:$0xff] %v969
                  %v971 = vld [vmem:[%s961 + $0x20] sm:$0xff]
                  %972 = vst [vmem:[%s962 + $0x20] sm:$0xff] %v971
                  %v973 = vld [vmem:[%s961 + $0x28] sm:$0xff]
                  %974 = vst [vmem:[%s962 + $0x28] sm:$0xff] %v973
                  %v975 = vld [vmem:[%s961 + $0x30] sm:$0xff]
                  %976 = vst [vmem:[%s962 + $0x30] sm:$0xff] %v975
                  %v977 = vld [vmem:[%s961 + $0x38] sm:$0xff]
                  %978 = vst [vmem:[%s962 + $0x38] sm:$0xff] %v977
                  %v979 = vld [vmem:[%s961 + $0x40] sm:$0xff]
                  %980 = vst [vmem:[%s962 + $0x40] sm:$0xff] %v979
                  %v981 = vld [vmem:[%s961 + $0x48] sm:$0xff]
                  %982 = vst [vmem:[%s962 + $0x48] sm:$0xff] %v981
                  %v983 = vld [vmem:[%s961 + $0x50] sm:$0xff]
                  %984 = vst [vmem:[%s962 + $0x50] sm:$0xff] %v983
                  %v985 = vld [vmem:[%s961 + $0x58] sm:$0xff]
                  %986 = vst [vmem:[%s962 + $0x58] sm:$0xff] %v985
                  %v987 = vld [vmem:[%s961 + $0x60] sm:$0xff]
                  %988 = vst [vmem:[%s962 + $0x60] sm:$0xff] %v987
                  %v989 = vld [vmem:[%s961 + $0x68] sm:$0xff]
                  %990 = vst [vmem:[%s962 + $0x68] sm:$0xff] %v989
                  %v991 = vld [vmem:[%s961 + $0x70] sm:$0xff]
                  %992 = vst [vmem:[%s962 + $0x70] sm:$0xff] %v991
                  %v993 = vld [vmem:[%s961 + $0x78] sm:$0xff]
                  %994 = vst [vmem:[%s962 + $0x78] sm:$0xff] %v993
                  %s995 = sadd.s32 1, %s960
                  %p996 = scmp.ge.s32.totalorder %s995, %s953
                  %s997 = scalar_select %p996, 0, %s995
                  %s998 = smul.u32 %s997, 128
                  %s999 = smul.u32 %s997, 128
                  %s1000 = scalar_lea.vmem %s856, %s998 [#allocation2]
                  %s1001 = scalar_lea.vmem %s867, %s999
                $region79: #{discrete_policy_forward.1} parent=73 // loop_footer
                  %s957 = sadd.s32 %s955, 1
                $region80: #{discrete_policy_forward.1} parent=73 // loop_footer_branch
                  %954 = sbr.rel target = $region76
                $region81: #{discrete_policy_forward.1} parent=73 // loop_exit
                  _
                %s1002 = sshrl.u32 %s863, 4
                %s1003 = sand.u32 %s863, 15
                %s1004 = smul.u32 %s1002, 16
                %s1005 = smul.u32 8, %s1004
                %s1006 = scalar_lea.vmem %s856, %s1005 [#allocation2]
                %s1007 = smul.u32 8, %s1004
                %s1008 = scalar_lea.vmem %s867, %s1007
                // While loop
                $region82: #{discrete_policy_forward.1} parent=73 // loop_pre_header
                  _
                $region83: #{discrete_policy_forward.1} parent=73 // loop_header
                  %s1010 = sphi 0, %s1012
                  %p1011 = scmp.ge.s32.totalorder %s1010, %s1003
                  %s1015 = sphi 0, %s1022
                  %s1016 = sphi %s1006, %s1025
                  %s1017 = sphi %s1008, %s1026
                $region84: #{discrete_policy_forward.1} parent=73 // loop_header_branch
                  %1014 = sbr.rel (%p1011) target = $region88
                $region85: #{discrete_policy_forward.1} parent=73 // loop_body
                  %v1018 = vld [vmem:[%s1016] sm:$0xff]
                  %1019 = vst [vmem:[%s1017] sm:$0xff] %v1018
                  %s1020 = sadd.s32 1, %s1015
                  %p1021 = scmp.ge.s32.totalorder %s1020, %s1003
                  %s1022 = scalar_select %p1021, 0, %s1020
                  %s1023 = smul.u32 %s1022, 8
                  %s1024 = smul.u32 %s1022, 8
                  %s1025 = scalar_lea.vmem %s1006, %s1023 [#allocation2]
                  %s1026 = scalar_lea.vmem %s1008, %s1024
                $region86: #{discrete_policy_forward.1} parent=73 // loop_footer
                  %s1012 = sadd.s32 %s1010, 1
                $region87: #{discrete_policy_forward.1} parent=73 // loop_footer_branch
                  %1009 = sbr.rel target = $region83
                $region88: #{discrete_policy_forward.1} parent=73 // loop_exit
                  _
              $region74: #{discrete_policy_forward.1} parent=51 // pred_fallthru
                _
              // Predicated region
              $region89: #{discrete_policy_forward.1} parent=51 // pred_check
                _
              $region90: #{discrete_policy_forward.1} parent=51 // pred_check_branch
                %1028 = sbr.rel target = $region92
              $region91: #{discrete_policy_forward.1} parent=51 // pred_region
                _
              $region92: #{discrete_policy_forward.1} parent=51 // pred_fallthru
                _
            $region52: #{discrete_policy_forward.1} parent=47 // pred_fallthru
              _
            // Predicated region
            $region53: #{discrete_policy_forward.1} parent=47 // pred_check
              _
            $region54: #{discrete_policy_forward.1} parent=47 // pred_check_branch
              %874 = sbr.rel target = $region56
            $region55: #{discrete_policy_forward.1} parent=47 // pred_region
              %s876 = ssub.s32 256, 1
              %s877 = sshrl.u32 %s863, 4
              // While loop
              $region57: #{discrete_policy_forward.1} parent=55 // loop_pre_header
                _
              $region58: #{discrete_policy_forward.1} parent=55 // loop_header
                %s879 = sphi 0, %s881
                %p880 = scmp.ge.s32.totalorder %s879, %s877
                %s884 = sphi 0, %s921
                %s885 = sphi %s856, %s924
                %s886 = sphi %s867, %s925
              $region59: #{discrete_policy_forward.1} parent=55 // loop_header_branch
                %883 = sbr.rel (%p880) target = $region63
              $region60: #{discrete_policy_forward.1} parent=55 // loop_body
                %v887 = vld [vmem:[%s885] sm:%s876]
                %888 = vst [vmem:[%s886] sm:%s876] %v887
                %v889 = vld [vmem:[%s885 + $0x8] sm:%s876]
                %890 = vst [vmem:[%s886 + $0x8] sm:%s876] %v889
                %v891 = vld [vmem:[%s885 + $0x10] sm:%s876]
                %892 = vst [vmem:[%s886 + $0x10] sm:%s876] %v891
                %v893 = vld [vmem:[%s885 + $0x18] sm:%s876]
                %894 = vst [vmem:[%s886 + $0x18] sm:%s876] %v893
                %v895 = vld [vmem:[%s885 + $0x20] sm:%s876]
                %896 = vst [vmem:[%s886 + $0x20] sm:%s876] %v895
                %v897 = vld [vmem:[%s885 + $0x28] sm:%s876]
                %898 = vst [vmem:[%s886 + $0x28] sm:%s876] %v897
                %v899 = vld [vmem:[%s885 + $0x30] sm:%s876]
                %900 = vst [vmem:[%s886 + $0x30] sm:%s876] %v899
                %v901 = vld [vmem:[%s885 + $0x38] sm:%s876]
                %902 = vst [vmem:[%s886 + $0x38] sm:%s876] %v901
                %v903 = vld [vmem:[%s885 + $0x40] sm:%s876]
                %904 = vst [vmem:[%s886 + $0x40] sm:%s876] %v903
                %v905 = vld [vmem:[%s885 + $0x48] sm:%s876]
                %906 = vst [vmem:[%s886 + $0x48] sm:%s876] %v905
                %v907 = vld [vmem:[%s885 + $0x50] sm:%s876]
                %908 = vst [vmem:[%s886 + $0x50] sm:%s876] %v907
                %v909 = vld [vmem:[%s885 + $0x58] sm:%s876]
                %910 = vst [vmem:[%s886 + $0x58] sm:%s876] %v909
                %v911 = vld [vmem:[%s885 + $0x60] sm:%s876]
                %912 = vst [vmem:[%s886 + $0x60] sm:%s876] %v911
                %v913 = vld [vmem:[%s885 + $0x68] sm:%s876]
                %914 = vst [vmem:[%s886 + $0x68] sm:%s876] %v913
                %v915 = vld [vmem:[%s885 + $0x70] sm:%s876]
                %916 = vst [vmem:[%s886 + $0x70] sm:%s876] %v915
                %v917 = vld [vmem:[%s885 + $0x78] sm:%s876]
                %918 = vst [vmem:[%s886 + $0x78] sm:%s876] %v917
                %s919 = sadd.s32 1, %s884
                %p920 = scmp.ge.s32.totalorder %s919, %s877
                %s921 = scalar_select %p920, 0, %s919
                %s922 = smul.u32 %s921, 128
                %s923 = smul.u32 %s921, 128
                %s924 = scalar_lea.vmem %s856, %s922 [#allocation2]
                %s925 = scalar_lea.vmem %s867, %s923
              $region61: #{discrete_policy_forward.1} parent=55 // loop_footer
                %s881 = sadd.s32 %s879, 1
              $region62: #{discrete_policy_forward.1} parent=55 // loop_footer_branch
                %878 = sbr.rel target = $region58
              $region63: #{discrete_policy_forward.1} parent=55 // loop_exit
                _
              %s926 = sshrl.u32 %s863, 4
              %s927 = sand.u32 %s863, 15
              %s928 = smul.u32 %s926, 16
              %s929 = smul.u32 8, %s928
              %s930 = scalar_lea.vmem %s856, %s929 [#allocation2]
              %s931 = smul.u32 8, %s928
              %s932 = scalar_lea.vmem %s867, %s931
              // While loop
              $region64: #{discrete_policy_forward.1} parent=55 // loop_pre_header
                _
              $region65: #{discrete_policy_forward.1} parent=55 // loop_header
                %s934 = sphi 0, %s936
                %p935 = scmp.ge.s32.totalorder %s934, %s927
                %s939 = sphi 0, %s946
                %s940 = sphi %s930, %s949
                %s941 = sphi %s932, %s950
              $region66: #{discrete_policy_forward.1} parent=55 // loop_header_branch
                %938 = sbr.rel (%p935) target = $region70
              $region67: #{discrete_policy_forward.1} parent=55 // loop_body
                %v942 = vld [vmem:[%s940] sm:%s876]
                %943 = vst [vmem:[%s941] sm:%s876] %v942
                %s944 = sadd.s32 1, %s939
                %p945 = scmp.ge.s32.totalorder %s944, %s927
                %s946 = scalar_select %p945, 0, %s944
                %s947 = smul.u32 %s946, 8
                %s948 = smul.u32 %s946, 8
                %s949 = scalar_lea.vmem %s930, %s947 [#allocation2]
                %s950 = scalar_lea.vmem %s932, %s948
              $region68: #{discrete_policy_forward.1} parent=55 // loop_footer
                %s936 = sadd.s32 %s934, 1
              $region69: #{discrete_policy_forward.1} parent=55 // loop_footer_branch
                %933 = sbr.rel target = $region65
              $region70: #{discrete_policy_forward.1} parent=55 // loop_exit
                _
            $region56: #{discrete_policy_forward.1} parent=47 // pred_fallthru
              _
          $region48: #{discrete_policy_forward.1} parent=43 // pred_fallthru
            _
          %1029 = vnop
        $region44: #{discrete_policy_forward.1} parent=39 // pred_fallthru
          _
      $region40: #{discrete_policy_forward.1} parent=5 // pred_fallthru
        _
      %p1030 = scmp.le.s32.totalorder 2, %s11
      // Predicated region
      $region93: #{discrete_policy_forward.1} parent=5 // pred_check
        %p1031 = pneg %p1030
      $region94: #{discrete_policy_forward.1} parent=5 // pred_check_branch
        %1033 = sbr.rel (%p1031) target = $region96
      $region95: #{discrete_policy_forward.1} parent=5 // pred_region
        %s1034 = ssub.s32 %s11, 2
        // Predicated region
        $region97: #{discrete_policy_forward.1} parent=95 // pred_check
          %p1035 = pneg %p150
        $region98: #{discrete_policy_forward.1} parent=95 // pred_check_branch
          %1037 = sbr.rel (%p1035) target = $region100
        $region99: #{discrete_policy_forward.1} parent=95 // pred_region
          %s1038 = sand.u32 %s135, 1
          %s1039 = sand.u32 %s135, 1
          %s1040 = smul.addr %s1039, 128
          %s1041 = scalar_lea.vmem [#allocation2], %s1040
        $region100: #{discrete_policy_forward.1} parent=95 // pred_fallthru
          _
      $region96: #{discrete_policy_forward.1} parent=5 // pred_fallthru
        _
    $region6: #{discrete_policy_forward.1} parent=1 // loop_footer
      %s15 = sadd.s32 1, %s11
    $region7: #{discrete_policy_forward.1} parent=1 // loop_footer_branch
      %10 = sbr.rel target = $region3
    $region8: #{discrete_policy_forward.1} parent=1 // loop_exit
      _

</llo_original>
